<compile_context>
chip_gen: v7x
topology: tpu7x:2x2x1
jax: 0.10.0
libtpu: 0.0.40
codegen_flags: <defaults>
</compile_context>

<pallas_src>
import jax
import jax.numpy as jnp
from jax import lax
from jax.experimental import pallas as pl
from jax.experimental.pallas import tpu as pltpu

# ---------------------------------------------------------------------------
# static problem sizes (small, consistent with the module's forward)
# ---------------------------------------------------------------------------
N = 8                    # max_num_nodes
F = 8                    # node feature dim
H = 32                   # GCN hidden dim
E = 16                   # embed_dim
HD = 64                  # decoder hidden dim
T = N * (N + 1) // 2     # upper-triangular (incl. diag) vector length = 36

# per-graph data slab (24, 128):
#   rows 0:8   lanes 0:N    adjacency (N, N)
#   rows 8:16  lanes 0:F    node features (N, F)
#   row  16    lanes 0:N*N  row-major flattened adjacency (for in-kernel triu)
D_ROWS = 3 * N           # 24

# parameter-slab row offsets (all blocks lane-0 aligned; resident over grid)
_R_W1 = 0          # (F, H)    rows 0:8
_R_B1 = 8          # (1, H)    row 8
_R_B2 = 9          # (1, H)    row 9
_R_BMS = 10        # (1, 2E)   row 10   (bmu | bsig fused)
_R_BD2 = 11        # (1, T)    row 11
_R_W2 = 16         # (H, H)    rows 16:48
_R_WMS = 48        # (H, 2E)   rows 48:80   (wmu | wsig fused)
_R_WD1T = 80       # (HD, E)   rows 80:144  (wd1 transposed), bd1 col at lane E
_R_WD2 = 144       # (HD, T)   rows 144:208
_R_SEL = 208       # (N*N, T)  rows 208:272 constant triu selection matrix
P_ROWS = 272

# packed-output lane layout (row 0 of each graph's (8, 128) output block)
_O_MU = 0                  # [0 : E)
_O_SIGMA = E               # [E : 2E)
_O_OUT = 2 * E             # [2E : 2E+T)
_O_LOSS = 2 * E + T        # [68]
_O_KL = _O_LOSS + 1        # [69]  (computed, matching the ref, but never
_O_END = _O_KL + 1         #        feeds the returned loss — unvalidated)


# ---------------------------------------------------------------------------
# fused Pallas kernel: encoder -> z = mu -> decoder -> BCE loss (+ KL term)
# one grid step == one graph; params stay VMEM-resident across the grid
# ---------------------------------------------------------------------------
def gvae_kernel(data_ref, p_ref, out_ref):
    # ---- unpack per-graph data slab ----
    a = data_ref[0:N, 0:N]                         # (N, N) adjacency
    x = data_ref[N:2 * N, 0:F]                     # (N, F) node features
    a_flat = data_ref[2 * N:2 * N + 1, 0:N * N]    # (1, N*N) flattened adj

    # ---- unpack parameter slab (static sub-views of one VMEM slab) ----
    w1 = p_ref[_R_W1:_R_W1 + F, 0:H]
    b1 = p_ref[_R_B1:_R_B1 + 1, 0:H]
    w2 = p_ref[_R_W2:_R_W2 + H, 0:H]
    b2 = p_ref[_R_B2:_R_B2 + 1, 0:H]
    wms = p_ref[_R_WMS:_R_WMS + H, 0:2 * E]        # fused mu|sigma weights
    bms = p_ref[_R_BMS:_R_BMS + 1, 0:2 * E]
    wd1t = p_ref[_R_WD1T:_R_WD1T + HD, 0:E]        # (HD, E) = wd1.T
    bd1c = p_ref[_R_WD1T:_R_WD1T + HD, E:E + 1]    # (HD, 1) = bd1.T
    wd2 = p_ref[_R_WD2:_R_WD2 + HD, 0:T]
    bd2 = p_ref[_R_BD2:_R_BD2 + 1, 0:T]
    sel = p_ref[_R_SEL:_R_SEL + N * N, 0:T]        # constant 0/1 triu gather

    # ---- encoder: 2-layer GCN (M=8 matmuls on the MXU) ----
    ax = jnp.dot(a, x, preferred_element_type=jnp.float32)
    h1 = jnp.maximum(
        jnp.dot(ax, w1, preferred_element_type=jnp.float32) + b1, 0.0)
    ah1 = jnp.dot(a, h1, preferred_element_type=jnp.float32)
    h2 = jnp.maximum(
        jnp.dot(ah1, w2, preferred_element_type=jnp.float32) + b2, 0.0)

    # fused mu|sigma head: sum-pool folded AFTER the matmul keeps M=8
    hm = jnp.dot(h2, wms, preferred_element_type=jnp.float32)      # (N, 2E)
    musig = jnp.sum(hm, axis=0, keepdims=True) + bms               # (1, 2E)
    mu = musig[:, 0:E]
    sigma = musig[:, E:2 * E]
    # (reference computes sigma.mul(0.5).exp_() and eps ~ randn, both unused;
    #  z = mu deterministically -- dead exp removed.)

    # ---- in-kernel upper-tri target gather: (1,64) @ (64,T) on the MXU ----
    t = jnp.dot(a_flat, sel, preferred_element_type=jnp.float32)   # (1, T)

    # ---- decoder MLP on z = mu: 1-row matvecs as VPU bcast-mul + XLU reduce
    z = mu                                                         # (1, E)
    hd = jnp.maximum(
        jnp.sum(z * wd1t, axis=1, keepdims=True) + bd1c, 0.0)      # (HD, 1)
    logits = jnp.sum(hd * wd2, axis=0, keepdims=True) + bd2        # (1, T)

    # ---- shared exp(-|l|) for sigmoid + BCE (one EUP exp, vrcp for divide)
    e = jnp.exp(-jnp.abs(logits))
    inv = pl.reciprocal(1.0 + e, approx=True)
    probs = jnp.where(logits >= 0.0, inv, e * inv)                 # sigmoid

    # adj_recon_loss = BCE(sigmoid(logits), target), mean reduction,
    # numerically-safe logits form: max(l,0) - l*t + log(1 + exp(-|l|))
    bce = jnp.sum(jnp.maximum(logits, 0.0) - logits * t + jnp.log(1.0 + e),
                  keepdims=True) / T                               # (1, 1)

    # loss_kl (computed in the reference forward but not returned)
    kl = (-0.5 / (N * N)) * jnp.sum(
        1.0 + sigma - mu * mu - jnp.exp(sigma), keepdims=True)     # (1, 1)

    # ---- single full-width store: one unmasked (8,128) vst, payload row 0
    packed = jnp.concatenate(
        [musig, probs, bce, kl,
         jnp.zeros((1, 128 - _O_END), jnp.float32)], axis=1)       # (1, 128)
    out_ref[...] = jnp.broadcast_to(packed, (N, 128))


def gvae_pallas(data_slab, param_slab):
    B = data_slab.shape[0]
    flops_per_graph = 2 * (N * N * F + N * F * H + N * N * H + N * H * H
                           + N * H * 2 * E + N * N * T + E * HD + HD * T)
    bytes_accessed = 4 * (B * (D_ROWS * 128 + N * 128) + P_ROWS * 128)
    return pl.pallas_call(
        gvae_kernel,
        out_shape=jax.ShapeDtypeStruct((B, N, 128), jnp.float32),
        grid_spec=pltpu.PrefetchScalarGridSpec(
            num_scalar_prefetch=0,
            grid=(B,),
            in_specs=[
                # per-graph data slab
                pl.BlockSpec((None, D_ROWS, 128), lambda b: (b, 0, 0)),
                # parameter slab: constant block index -> DMA'd once, resident
                pl.BlockSpec((P_ROWS, 128), lambda b: (0, 0)),
            ],
            out_specs=pl.BlockSpec((None, N, 128), lambda b: (b, 0, 0)),
        ),
        compiler_params=pltpu.CompilerParams(
            dimension_semantics=("parallel",)),   # megacore on v7x
        cost_estimate=pl.CostEstimate(
            flops=B * flops_per_graph,
            transcendentals=B * (2 * T + E),
            bytes_accessed=bytes_accessed),
    )(data_slab, param_slab)


# ---------------------------------------------------------------------------
# slab packing (params packed once; batched data packed per call, few XLA ops)
# ---------------------------------------------------------------------------
def _triu_select_matrix():
    """(N*N, T) 0/1 matrix: column k is one-hot at flat index of k-th triu."""
    iu = jnp.triu_indices(N)
    flat = iu[0] * N + iu[1]
    return jax.nn.one_hot(flat, N * N, dtype=jnp.float32).T


def pack_params(params):
    (w1, b1, w2, b2, wmu, bmu, wsig, bsig, wd1, bd1, wd2, bd2) = params
    s = jnp.zeros((P_ROWS, 128), jnp.float32)
    s = s.at[_R_W1:_R_W1 + F, 0:H].set(w1)
    s = s.at[_R_B1, 0:H].set(b1[0])
    s = s.at[_R_B2, 0:H].set(b2[0])
    s = s.at[_R_BMS, 0:2 * E].set(jnp.concatenate([bmu, bsig], axis=1)[0])
    s = s.at[_R_BD2, 0:T].set(bd2[0])
    s = s.at[_R_W2:_R_W2 + H, 0:H].set(w2)
    s = s.at[_R_WMS:_R_WMS + H, 0:2 * E].set(jnp.concatenate([wmu, wsig], 1))
    s = s.at[_R_WD1T:_R_WD1T + HD, 0:E].set(wd1.T)
    s = s.at[_R_WD1T:_R_WD1T + HD, E:E + 1].set(bd1.T)
    s = s.at[_R_WD2:_R_WD2 + HD, 0:T].set(wd2)
    s = s.at[_R_SEL:_R_SEL + N * N, 0:T].set(_triu_select_matrix())
    return s


def pack_data(x, adj):
    """Batched (B, D_ROWS, 128) data slab from a handful of pad/concat ops."""
    B = adj.shape[0]
    top = jnp.pad(adj, ((0, 0), (0, 0), (0, 128 - N)))                # adj
    mid = jnp.pad(x, ((0, 0), (0, 0), (0, 128 - F)))                  # features
    bot = jnp.pad(adj.reshape(B, 1, N * N),
                  ((0, 0), (0, N - 1), (0, 128 - N * N)))             # flat adj
    return jnp.concatenate([top, mid, bot], axis=1)


# ---------------------------------------------------------------------------
# graph-matching bookkeeping of the reference forward (plain JAX, vectorized).
# It does not feed the returned loss in the reference either -> optional.
# ---------------------------------------------------------------------------
def edge_similarity_matrix(adj, adj_recon, mf, mfr):
    n = adj.shape[0]
    eye = jnp.eye(n, dtype=adj.dtype)
    d_adj = jnp.diag(adj)
    d_rec = jnp.diag(adj_recon)
    sim = 1.0 / (jnp.abs(mf[:, None] - mfr[None, :]) + 1.0)          # sim[i, a]
    s_diag_vals = d_adj[:, None] * d_rec[None, :] * sim              # S[i,i,a,a]
    s_diag = jnp.einsum('ij,ab,ia->ijab', eye, eye, s_diag_vals)
    left = adj * d_adj[:, None] * d_adj[None, :]
    right = adj_recon * d_rec[:, None] * d_rec[None, :]
    s_off = left[:, :, None, None] * right[None, None, :, :]
    s_off = s_off * (1.0 - eye)[:, :, None, None] * (1.0 - eye)[None, None, :, :]
    return s_diag + s_off


def mpm(x_init, S, max_iters=50):
    s_diag = jnp.einsum('iiaa->ia', S)

    def body(_, xc):
        term = xc * s_diag
        pooled = jnp.max(xc[None, :, None, :] * S, axis=-1)          # (i, j, a)
        neigh = jnp.sum(pooled, axis=1) - jnp.einsum('iia->ia', pooled)
        x_new = term + neigh
        return x_new / jnp.linalg.norm(x_new)

    return lax.fori_loop(0, max_iters, body, x_init)


def _recover_full_adj(vec):
    iu = jnp.triu_indices(N)
    upper = jnp.zeros((N, N), vec.dtype).at[iu].set(vec)
    return upper + upper.T - jnp.diag(jnp.diag(upper))


# ---------------------------------------------------------------------------
# full forward (mirrors GraphVAE.forward per graph; returns recon loss (B,))
# ---------------------------------------------------------------------------
def graph_vae_forward(x, adj, param_slab, compute_assignment=False):
    packed = gvae_pallas(pack_data(x, adj), param_slab)[:, 0, :]     # (B, 128)
    loss = packed[:, _O_LOSS]

    if not compute_assignment:
        return loss

    probs = packed[:, _O_OUT:_O_OUT + T]
    recon = jax.vmap(_recover_full_adj)(probs)
    out_feat = jnp.sum(recon, axis=2)
    adj_feat = jnp.sum(adj, axis=2)
    S = jax.vmap(edge_similarity_matrix)(adj, recon, adj_feat, out_feat)
    init = jnp.full((N, N), 1.0 / N, jnp.float32)
    assignment = jax.vmap(lambda s: mpm(init, s))(S)
    # TODO(synk): scipy.optimize.linear_sum_assignment (Hungarian) has no
    # JAX/Pallas equivalent; its result is unused by the reference loss.
    return loss, assignment


# ---------------------------------------------------------------------------
# deterministic parameter init
# ---------------------------------------------------------------------------
def init_params(key):
    ks = jax.random.split(key, 6)

    def w(k, shape):
        return (0.1 * jax.random.normal(k, shape)).astype(jnp.float32)

    w1, b1 = w(ks[0], (F, H)), jnp.zeros((1, H), jnp.float32)
    w2, b2 = w(ks[1], (H, H)), jnp.zeros((1, H), jnp.float32)
    wmu, bmu = w(ks[2], (H, E)), jnp.zeros((1, E), jnp.float32)
    wsig, bsig = w(ks[3], (H, E)), jnp.zeros((1, E), jnp.float32)
    wd1, bd1 = w(ks[4], (E, HD)), jnp.zeros((1, HD), jnp.float32)
    wd2, bd2 = w(ks[5], (HD, T)), jnp.zeros((1, T), jnp.float32)
    return (w1, b1, w2, b2, wmu, bmu, wsig, bsig, wd1, bd1, wd2, bd2)


# pure-JAX reference of the per-graph loss (reference semantics: BCE on probs)
def _ref_loss(xg, ag, params):
    (w1, b1, w2, b2, wmu, bmu, wsig, bsig, wd1, bd1, wd2, bd2) = params
    h1 = jnp.maximum(ag @ xg @ w1 + b1, 0.0)
    h2 = jnp.maximum(ag @ h1 @ w2 + b2, 0.0)
    g = jnp.sum(h2, axis=0, keepdims=True)
    mu = g @ wmu + bmu
    hd = jnp.maximum(mu @ wd1 + bd1, 0.0)
    out = jax.nn.sigmoid(hd @ wd2 + bd2)
    p = jnp.clip(out, 1e-7, 1.0 - 1e-7)
    iu = jnp.triu_indices(N)
    t = ag[iu][None, :]
    return -jnp.mean(t * jnp.log(p) + (1.0 - t) * jnp.log(1.0 - p))


if __name__ == "__main__":
    key = jax.random.PRNGKey(0)
    k_x, k_adj, k_p = jax.random.split(key, 3)
    B = 8                                            # graphs per batch

    x = jax.random.normal(k_x, (B, N, F), jnp.float32)
    u = jnp.triu((jax.random.uniform(k_adj, (B, N, N)) < 0.4).astype(jnp.float32), 1)
    adj = u + jnp.swapaxes(u, 1, 2) + jnp.eye(N, dtype=jnp.float32)[None]

    params = init_params(k_p)
    param_slab = pack_params(params)                 # packed once

    loss = jax.jit(graph_vae_forward)(x, adj, param_slab)
    jax.block_until_ready(loss)

    # correctness check against a plain-JAX reference of the loss path
    ref = jax.vmap(lambda xg, ag: _ref_loss(xg, ag, params))(x, adj)
    assert loss.shape == (B,)
    assert bool(jnp.all(jnp.isfinite(loss))), "loss is not finite"
    assert jnp.allclose(loss, ref, rtol=1e-3, atol=1e-3), (loss, ref)

    print("KERNEL_OK")
</pallas_src>

<mosaic_0001>
module attributes {stable_mosaic.version = 11 : i64} {
  func.func @gvae_kernel(%arg0: i32, %arg1: memref<1x24x128xf32, #tpu.memory_space<vmem>>, %arg2: memref<272x128xf32, #tpu.memory_space<vmem>>, %arg3: memref<1x8x128xf32, #tpu.memory_space<vmem>>) attributes {dimension_semantics = [#tpu.dimension_semantics<parallel>], iteration_bounds = array<i64: 8>, scalar_prefetch = 0 : i64, scratch_operands = 0 : i64, tpu.core_type = #tpu.core_type<tc>, window_params = [{transform_indices = @transform_0, window_bounds = array<i64: 1, 24, 128>}, {pipeline_mode = #tpu.pipeline_mode<synchronous>, transform_indices = @transform_1, window_bounds = array<i64: 272, 128>}, {transform_indices = @transform_2, window_bounds = array<i64: 1, 8, 128>}]} {
    %c0 = arith.constant 0 : index
    %c0_0 = arith.constant 0 : index
    %c0_1 = arith.constant 0 : index
    %0 = vector.load %arg1[%c0, %c0_0, %c0_1] : memref<1x24x128xf32, #tpu.memory_space<vmem>>, vector<1x8x8xf32>
    %1 = vector.shape_cast %0 : vector<1x8x8xf32> to vector<8x8xf32>
    %c0_2 = arith.constant 0 : index
    %c8 = arith.constant 8 : index
    %c0_3 = arith.constant 0 : index
    %2 = vector.load %arg1[%c0_2, %c8, %c0_3] : memref<1x24x128xf32, #tpu.memory_space<vmem>>, vector<1x8x8xf32>
    %3 = vector.shape_cast %2 : vector<1x8x8xf32> to vector<8x8xf32>
    %c0_4 = arith.constant 0 : index
    %c16 = arith.constant 16 : index
    %c0_5 = arith.constant 0 : index
    %4 = vector.load %arg1[%c0_4, %c16, %c0_5] : memref<1x24x128xf32, #tpu.memory_space<vmem>>, vector<1x1x64xf32>
    %5 = vector.shape_cast %4 : vector<1x1x64xf32> to vector<1x64xf32>
    %c0_6 = arith.constant 0 : index
    %c0_7 = arith.constant 0 : index
    %6 = vector.load %arg2[%c0_6, %c0_7] : memref<272x128xf32, #tpu.memory_space<vmem>>, vector<8x32xf32>
    %c8_8 = arith.constant 8 : index
    %c0_9 = arith.constant 0 : index
    %7 = vector.load %arg2[%c8_8, %c0_9] : memref<272x128xf32, #tpu.memory_space<vmem>>, vector<1x32xf32>
    %c16_10 = arith.constant 16 : index
    %c0_11 = arith.constant 0 : index
    %8 = vector.load %arg2[%c16_10, %c0_11] : memref<272x128xf32, #tpu.memory_space<vmem>>, vector<32x32xf32>
    %c9 = arith.constant 9 : index
    %c0_12 = arith.constant 0 : index
    %9 = vector.load %arg2[%c9, %c0_12] : memref<272x128xf32, #tpu.memory_space<vmem>>, vector<1x32xf32>
    %c48 = arith.constant 48 : index
    %c0_13 = arith.constant 0 : index
    %10 = vector.load %arg2[%c48, %c0_13] : memref<272x128xf32, #tpu.memory_space<vmem>>, vector<32x32xf32>
    %c10 = arith.constant 10 : index
    %c0_14 = arith.constant 0 : index
    %11 = vector.load %arg2[%c10, %c0_14] : memref<272x128xf32, #tpu.memory_space<vmem>>, vector<1x32xf32>
    %c80 = arith.constant 80 : index
    %c0_15 = arith.constant 0 : index
    %12 = vector.load %arg2[%c80, %c0_15] : memref<272x128xf32, #tpu.memory_space<vmem>>, vector<64x16xf32>
    %c80_16 = arith.constant 80 : index
    %c16_17 = arith.constant 16 : index
    %13 = vector.load %arg2[%c80_16, %c16_17] : memref<272x128xf32, #tpu.memory_space<vmem>>, vector<64x1xf32>
    %c144 = arith.constant 144 : index
    %c0_18 = arith.constant 0 : index
    %14 = vector.load %arg2[%c144, %c0_18] : memref<272x128xf32, #tpu.memory_space<vmem>>, vector<64x36xf32>
    %c11 = arith.constant 11 : index
    %c0_19 = arith.constant 0 : index
    %15 = vector.load %arg2[%c11, %c0_19] : memref<272x128xf32, #tpu.memory_space<vmem>>, vector<1x36xf32>
    %c208 = arith.constant 208 : index
    %c0_20 = arith.constant 0 : index
    %16 = vector.load %arg2[%c208, %c0_20] : memref<272x128xf32, #tpu.memory_space<vmem>>, vector<64x36xf32>
    %cst = arith.constant dense<0.000000e+00> : vector<8x8xf32>
    %17 = tpu.matmul %1, %3, %cst {dimension_numbers = #tpu.dot_dimension_numbers<[1], [0], [0], [1], [0, 0, 1, 1], [], []>} : vector<8x8xf32>, vector<8x8xf32>, vector<8x8xf32> -> vector<8x8xf32>
    %cst_21 = arith.constant dense<0.000000e+00> : vector<8x32xf32>
    %18 = tpu.matmul %17, %6, %cst_21 {dimension_numbers = #tpu.dot_dimension_numbers<[1], [0], [0], [1], [0, 0, 1, 1], [], []>} : vector<8x8xf32>, vector<8x32xf32>, vector<8x32xf32> -> vector<8x32xf32>
    %19 = vector.broadcast %7 : vector<1x32xf32> to vector<8x32xf32>
    %20 = arith.addf %18, %19 : vector<8x32xf32>
    %cst_22 = arith.constant 0.000000e+00 : f32
    %21 = vector.broadcast %cst_22 : f32 to vector<8x32xf32>
    %22 = arith.maximumf %20, %21 : vector<8x32xf32>
    %cst_23 = arith.constant dense<0.000000e+00> : vector<8x32xf32>
    %23 = tpu.matmul %1, %22, %cst_23 {dimension_numbers = #tpu.dot_dimension_numbers<[1], [0], [0], [1], [0, 0, 1, 1], [], []>} : vector<8x8xf32>, vector<8x32xf32>, vector<8x32xf32> -> vector<8x32xf32>
    %cst_24 = arith.constant dense<0.000000e+00> : vector<8x32xf32>
    %24 = tpu.matmul %23, %8, %cst_24 {dimension_numbers = #tpu.dot_dimension_numbers<[1], [0], [0], [1], [0, 0, 1, 1], [], []>} : vector<8x32xf32>, vector<32x32xf32>, vector<8x32xf32> -> vector<8x32xf32>
    %25 = vector.broadcast %9 : vector<1x32xf32> to vector<8x32xf32>
    %26 = arith.addf %24, %25 : vector<8x32xf32>
    %cst_25 = arith.constant 0.000000e+00 : f32
    %27 = vector.broadcast %cst_25 : f32 to vector<8x32xf32>
    %28 = arith.maximumf %26, %27 : vector<8x32xf32>
    %cst_26 = arith.constant dense<0.000000e+00> : vector<8x32xf32>
    %29 = tpu.matmul %28, %10, %cst_26 {dimension_numbers = #tpu.dot_dimension_numbers<[1], [0], [0], [1], [0, 0, 1, 1], [], []>} : vector<8x32xf32>, vector<32x32xf32>, vector<8x32xf32> -> vector<8x32xf32>
    %cst_27 = arith.constant dense<0.000000e+00> : vector<32xf32>
    %30 = vector.multi_reduction <add>, %29, %cst_27 [0] : vector<8x32xf32> to vector<32xf32>
    %31 = vector.shape_cast %30 : vector<32xf32> to vector<1x32xf32>
    %32 = arith.addf %31, %11 : vector<1x32xf32>
    %33 = vector.extract_strided_slice %32 {offsets = [0, 0], sizes = [1, 16], strides = [1, 1]} : vector<1x32xf32> to vector<1x16xf32>
    %34 = vector.extract_strided_slice %32 {offsets = [0, 16], sizes = [1, 16], strides = [1, 1]} : vector<1x32xf32> to vector<1x16xf32>
    %cst_28 = arith.constant dense<0.000000e+00> : vector<1x36xf32>
    %35 = tpu.matmul %5, %16, %cst_28 {dimension_numbers = #tpu.dot_dimension_numbers<[1], [0], [0], [1], [0, 0, 1, 1], [], []>} : vector<1x64xf32>, vector<64x36xf32>, vector<1x36xf32> -> vector<1x36xf32>
    %36 = vector.broadcast %33 : vector<1x16xf32> to vector<64x16xf32>
    %37 = arith.mulf %36, %12 : vector<64x16xf32>
    %cst_29 = arith.constant dense<0.000000e+00> : vector<64xf32>
    %38 = vector.multi_reduction <add>, %37, %cst_29 [1] : vector<64x16xf32> to vector<64xf32>
    %39 = vector.shape_cast %38 : vector<64xf32> to vector<64x1xf32>
    %40 = arith.addf %39, %13 : vector<64x1xf32>
    %cst_30 = arith.constant 0.000000e+00 : f32
    %41 = vector.broadcast %cst_30 : f32 to vector<64x1xf32>
    %42 = arith.maximumf %40, %41 : vector<64x1xf32>
    %43 = vector.broadcast %42 : vector<64x1xf32> to vector<64x36xf32>
    %44 = arith.mulf %43, %14 : vector<64x36xf32>
    %cst_31 = arith.constant dense<0.000000e+00> : vector<36xf32>
    %45 = vector.multi_reduction <add>, %44, %cst_31 [0] : vector<64x36xf32> to vector<36xf32>
    %46 = vector.shape_cast %45 : vector<36xf32> to vector<1x36xf32>
    %47 = arith.addf %46, %15 : vector<1x36xf32>
    %48 = math.absf %47 : vector<1x36xf32>
    %cst_32 = arith.constant 0.000000e+00 : f32
    %49 = vector.broadcast %cst_32 : f32 to vector<1x36xf32>
    %50 = arith.subf %49, %48 : vector<1x36xf32>
    %51 = math.exp %50 : vector<1x36xf32>
    %cst_33 = arith.constant 1.000000e+00 : f32
    %52 = vector.broadcast %cst_33 : f32 to vector<1x36xf32>
    %53 = arith.addf %52, %51 : vector<1x36xf32>
    %54 = tpu.reciprocal %53 {approx = true} : vector<1x36xf32> -> vector<1x36xf32>
    %cst_34 = arith.constant 0.000000e+00 : f32
    %55 = vector.broadcast %cst_34 : f32 to vector<1x36xf32>
    %56 = arith.cmpf oge, %47, %55 : vector<1x36xf32>
    %57 = arith.mulf %51, %54 : vector<1x36xf32>
    %58 = arith.select %56, %54, %57 : vector<1x36xi1>, vector<1x36xf32>
    %cst_35 = arith.constant 0.000000e+00 : f32
    %59 = vector.broadcast %cst_35 : f32 to vector<1x36xf32>
    %60 = arith.maximumf %47, %59 : vector<1x36xf32>
    %61 = arith.mulf %47, %35 : vector<1x36xf32>
    %62 = arith.subf %60, %61 : vector<1x36xf32>
    %cst_36 = arith.constant 1.000000e+00 : f32
    %63 = vector.broadcast %cst_36 : f32 to vector<1x36xf32>
    %64 = arith.addf %63, %51 : vector<1x36xf32>
    %65 = math.log %64 : vector<1x36xf32>
    %66 = arith.addf %62, %65 : vector<1x36xf32>
    %67 = vector.shape_cast %66 : vector<1x36xf32> to vector<1x1x36xf32>
    %cst_37 = arith.constant dense<0.000000e+00> : vector<1xf32>
    %68 = vector.multi_reduction <add>, %67, %cst_37 [1, 2] : vector<1x1x36xf32> to vector<1xf32>
    %69 = vector.shape_cast %68 : vector<1xf32> to vector<1x1x1xf32>
    %70 = vector.extract %69[0, 0, 0] : f32 from vector<1x1x1xf32>
    %71 = vector.broadcast %70 : f32 to vector<1x1xf32>
    %cst_38 = arith.constant 3.600000e+01 : f32
    %72 = vector.broadcast %cst_38 : f32 to vector<1x1xf32>
    %73 = arith.divf %71, %72 : vector<1x1xf32>
    %cst_39 = arith.constant 1.000000e+00 : f32
    %74 = vector.broadcast %cst_39 : f32 to vector<1x16xf32>
    %75 = arith.addf %74, %34 : vector<1x16xf32>
    %76 = arith.mulf %33, %33 : vector<1x16xf32>
    %77 = arith.subf %75, %76 : vector<1x16xf32>
    %78 = math.exp %34 : vector<1x16xf32>
    %79 = arith.subf %77, %78 : vector<1x16xf32>
    %80 = vector.shape_cast %79 : vector<1x16xf32> to vector<1x1x16xf32>
    %cst_40 = arith.constant dense<0.000000e+00> : vector<1xf32>
    %81 = vector.multi_reduction <add>, %80, %cst_40 [1, 2] : vector<1x1x16xf32> to vector<1xf32>
    %82 = vector.shape_cast %81 : vector<1xf32> to vector<1x1x1xf32>
    %83 = vector.extract %82[0, 0, 0] : f32 from vector<1x1x1xf32>
    %84 = vector.broadcast %83 : f32 to vector<1x1xf32>
    %cst_41 = arith.constant -7.812500e-03 : f32
    %85 = vector.broadcast %cst_41 : f32 to vector<1x1xf32>
    %86 = arith.mulf %85, %84 : vector<1x1xf32>
    %cst_42 = arith.constant 0.000000e+00 : f32
    %87 = vector.broadcast %cst_42 : f32 to vector<1x58xf32>
    %88 = tpu.concatenate %32, %58, %73, %86, %87 in 1 : vector<1x32xf32>, vector<1x36xf32>, vector<1x1xf32>, vector<1x1xf32>, vector<1x58xf32> -> vector<1x128xf32>
    %89 = vector.shape_cast %88 : vector<1x128xf32> to vector<1x128xf32>
    %90 = vector.broadcast %89 : vector<1x128xf32> to vector<8x128xf32>
    %c0_43 = arith.constant 0 : index
    %c0_44 = arith.constant 0 : index
    %c0_45 = arith.constant 0 : index
    %91 = vector.load %arg3[%c0_43, %c0_44, %c0_45] : memref<1x8x128xf32, #tpu.memory_space<vmem>>, vector<1x8x128xf32>
    %92 = vector.shape_cast %91 : vector<1x8x128xf32> to vector<8x128xf32>
    %93 = vector.shape_cast %90 : vector<8x128xf32> to vector<1x8x128xf32>
    tpu.vector_store %arg3[%c0_43, %c0_44, %c0_45], %93 {strides = array<i32>} : memref<1x8x128xf32, #tpu.memory_space<vmem>>, vector<1x8x128xf32>,
    return
  }
  func.func @transform_0(%arg0: i32) -> (i32, i32, i32) {
    %c0_i32 = arith.constant 0 : i32
    %c0_i32_0 = arith.constant 0 : i32
    %c0_i32_1 = arith.constant 0 : i32
    return %arg0, %c0_i32, %c0_i32_0 : i32, i32, i32
  }
  func.func @transform_1(%arg0: i32) -> (i32, i32) {
    %c0_i32 = arith.constant 0 : i32
    %c0_i32_0 = arith.constant 0 : i32
    %c0_i32_1 = arith.constant 0 : i32
    return %c0_i32, %c0_i32_0 : i32, i32
  }
  func.func @transform_2(%arg0: i32) -> (i32, i32, i32) {
    %c0_i32 = arith.constant 0 : i32
    %c0_i32_0 = arith.constant 0 : i32
    %c0_i32_1 = arith.constant 0 : i32
    return %arg0, %c0_i32, %c0_i32_0 : i32, i32, i32
  }
}

</mosaic_0001>

<llo_original>
// kernel: graph_vae_forward.1
$region0: #{graph_vae_forward.1}
  #allocation0 [shape = 'u32[]', space=smem, size = 0x4, offset = 0x4, fixed_abs, tag = 'smem constant byte address 0x4 - core index']
  #allocation1 [shape = 'u32[144,128]{1,0:T(1,128)}', space=vmem, size = 0x12000, scoped, tag = 'internal scratch']
  %s0 = inlined_call_operand.vmem [shape: f32[8,24,128], index: 0, kind: input, shape index: {}]
  %s1 = inlined_call_operand.vmem [shape: f32[272,128], index: 1, kind: input, shape index: {}]
  %s2 = inlined_call_operand.vmem [shape: f32[8,8,128], index: 2, kind: output, shape index: {}]
  %s3 = sld [smem:[#allocation0]]
  $region41: #{graph_vae_forward.1} parent=0
    _
  %s5 = ssub.s32 1, %s3
  %s6 = scalar_select 0, %s5, %s3
  loop: start=0, step=1, limit=10
  $region2: #{graph_vae_forward.1} parent=0 // loop_pre_header
    _
  $region3: #{graph_vae_forward.1} parent=0 // loop_header
    %s8 = sphi 0, %s12
    %p9 = scmp.ge.s32.totalorder %s8, 10
    %s18 = sphi 0, %s20
    %s21 = sphi 0, %s18
    %s22 = sphi 0, %s21
    %s38 = sphi 0, %s22
    %s42 = sphi 0, %s42
    %s44 = sphi 0, %s42
    %s45 = sphi 0, %s44
    %s59 = sphi 0, %s45
    %s65 = sphi 0, %s67
    %s68 = sphi 0, %s65
    %s69 = sphi 0, %s68
    %s85 = sphi 0, %s69
  $region4: #{graph_vae_forward.1} parent=0 // loop_header_branch
    %11 = sbr.rel (%p9) target = $region8
  $region5: #{graph_vae_forward.1} parent=0 // loop_body
    %s13 = ssub.s32 %s8, 1
    %s14 = ssub.s32 %s8, 2
    %s15 = sadd.s32 %s8, 1
    %s16 = ssub.s32 %s8, %s15
    %p17 = scmp.eq.s32.totalorder %s16, 0
    %s19 = sadd.s32 %s18, 1
    %s20 = scalar_select %p17, %s18, %s19
    %p23 = pneg %p17
    %p24 = scmp.eq.s32.totalorder %s8, 7
    %p25 = por %p23, %p24
    %p26 = scmp.ne.s32.totalorder %s18, %s21
    %p27 = scmp.eq.s32.totalorder %s8, 0
    %p28 = por %p26, %p27
    %p29 = scmp.ne.s32.totalorder %s18, %s21
    %p30 = scmp.eq.s32.totalorder %s13, 7
    %p31 = por %p29, %p30
    %p32 = scmp.ne.s32.totalorder %s21, %s22
    %p33 = scmp.eq.s32.totalorder %s13, 0
    %p34 = por %p32, %p33
    %p35 = scmp.ne.s32.totalorder %s21, %s22
    %p36 = scmp.eq.s32.totalorder %s14, 7
    %p37 = por %p35, %p36
    %p39 = scmp.ne.s32.totalorder %s22, %s38
    %p40 = scmp.eq.s32.totalorder %s14, 0
    %p41 = por %p39, %p40
    %s43 = sadd.s32 %s42, 1
    %p46 = scmp.eq.s32.totalorder %s8, 7
    %p47 = scmp.ne.s32.totalorder %s42, %s44
    %p48 = scmp.eq.s32.totalorder %s8, 0
    %p49 = por %p47, %p48
    %p50 = scmp.ne.s32.totalorder %s42, %s44
    %p51 = scmp.eq.s32.totalorder %s13, 7
    %p52 = por %p50, %p51
    %p53 = scmp.ne.s32.totalorder %s44, %s45
    %p54 = scmp.eq.s32.totalorder %s13, 0
    %p55 = por %p53, %p54
    %p56 = scmp.ne.s32.totalorder %s44, %s45
    %p57 = scmp.eq.s32.totalorder %s14, 7
    %p58 = por %p56, %p57
    %p60 = scmp.ne.s32.totalorder %s45, %s59
    %p61 = scmp.eq.s32.totalorder %s14, 0
    %p62 = por %p60, %p61
    %s63 = ssub.s32 %s8, %s15
    %p64 = scmp.eq.s32.totalorder %s63, 0
    %s66 = sadd.s32 %s65, 1
    %s67 = scalar_select %p64, %s65, %s66
    %p70 = pneg %p64
    %p71 = scmp.eq.s32.totalorder %s8, 7
    %p72 = por %p70, %p71
    %p73 = scmp.ne.s32.totalorder %s65, %s68
    %p74 = scmp.eq.s32.totalorder %s8, 0
    %p75 = por %p73, %p74
    %p76 = scmp.ne.s32.totalorder %s65, %s68
    %p77 = scmp.eq.s32.totalorder %s13, 7
    %p78 = por %p76, %p77
    %p79 = scmp.ne.s32.totalorder %s68, %s69
    %p80 = scmp.eq.s32.totalorder %s13, 0
    %p81 = por %p79, %p80
    %p82 = scmp.ne.s32.totalorder %s68, %s69
    %p83 = scmp.eq.s32.totalorder %s14, 7
    %p84 = por %p82, %p83
    %p86 = scmp.ne.s32.totalorder %s69, %s85
    %p87 = scmp.eq.s32.totalorder %s14, 0
    %p88 = por %p86, %p87
    %p89 = scmp.le.s32.totalorder 1, %s8
    %p90 = scmp.lt.s32.totalorder %s8, 9
    %p91 = pnand %p89, %p90
    %p92 = pneg %p91
    // Predicated region
    $region9: #{graph_vae_forward.1} parent=5 // pred_check
      _
    $region10: #{graph_vae_forward.1} parent=5 // pred_check_branch
      %94 = sbr.rel (%p91) target = $region12
    $region11: #{graph_vae_forward.1} parent=5 // pred_region
      %s95 = ssub.s32 %s8, 1
      // Predicated region
      $region13: #{graph_vae_forward.1} parent=11 // pred_check
        %p96 = pneg %p55
      $region14: #{graph_vae_forward.1} parent=11 // pred_check_branch
        %98 = sbr.rel (%p96) target = $region16
      $region15: #{graph_vae_forward.1} parent=11 // pred_region
        _
      $region16: #{graph_vae_forward.1} parent=11 // pred_fallthru
        _
    $region12: #{graph_vae_forward.1} parent=5 // pred_fallthru
      _
    %p99 = scmp.lt.s32.totalorder %s8, 8
    // Predicated region
    $region17: #{graph_vae_forward.1} parent=5 // pred_check
      %p100 = pneg %p99
    $region18: #{graph_vae_forward.1} parent=5 // pred_check_branch
      %102 = sbr.rel (%p100) target = $region20
    $region19: #{graph_vae_forward.1} parent=5 // pred_region
      // Predicated region
      $region21: #{graph_vae_forward.1} parent=19 // pred_check
        %p103 = pneg %p28
      $region22: #{graph_vae_forward.1} parent=19 // pred_check_branch
        %105 = sbr.rel (%p103) target = $region24
      $region23: #{graph_vae_forward.1} parent=19 // pred_region
        %p106 = scmp.lt.s32.totalorder %s8, 7
        %s107 = scalar_select %p106, %s8, 7
        %s108 = smul.addr %s107, 3
        %s109 = smul.addr %s108, 8
        %s110 = scalar_lea.vmem %s0, %s109
      $region24: #{graph_vae_forward.1} parent=19 // pred_fallthru
        _
    $region20: #{graph_vae_forward.1} parent=5 // pred_fallthru
      _
    %p111 = scmp.le.s32.totalorder 1, %s8
    %p112 = scmp.lt.s32.totalorder %s8, 9
    %p113 = pnand %p111, %p112
    %p114 = pneg %p113
    // Predicated region
    $region25: #{graph_vae_forward.1} parent=5 // pred_check
      _
    $region26: #{graph_vae_forward.1} parent=5 // pred_check_branch
      %116 = sbr.rel (%p113) target = $region28
    $region27: #{graph_vae_forward.1} parent=5 // pred_region
      %s117 = ssub.s32 %s8, 1
      %p118 = scmp.lt.s32.totalorder %s13, 7
      %s119 = scalar_select %p118, %s13, 7
      %s120 = smul.addr %s119, 3
      %s121 = smul.addr %s120, 8
      %s122 = scalar_lea.vmem %s0, %s121
      %p123 = pneg %p34
      %p124 = pneg %p31
      %p125 = pneg %p55
      %p126 = pneg %p52
      %p127 = pneg %p81
      %p128 = pneg %p78
      %p129 = scmp.lt.s32.totalorder %s13, 7
      %s130 = scalar_select %p129, %s13, 7
      %s131 = smul.addr %s130, 8
      %s132 = scalar_lea.vmem %s2, %s131
      %p133 = scmp.lt.s32.totalorder %s13, 7
      %s134 = scalar_select %p133, %s13, 7
      %s135 = smul.addr %s134, 3
      %s136 = smul.addr %s135, 8
      %s137 = scalar_lea.vmem %s0, %s136
      %p138 = scmp.lt.s32.totalorder %s13, 7
      %s139 = scalar_select %p138, %s13, 7
      %s140 = smul.addr %s139, 8
      %s141 = scalar_lea.vmem %s2, %s140
      %v142 = vld [vmem:[%s137] sm:$0xff]
      %v143 = vld [vmem:[%s137 + $0x8] sm:$0xff]
      %v144 = vld [vmem:[%s137 + $0x10] sm:$0x1]
      %v145 = vld [vmem:[%s1] sm:$0xff]
      %v146 = vld [vmem:[%s1 + $0x8] sm:$0x1]
      %v147 = vld [vmem:[%s1 + $0x10] sm:$0xff]
      %v148 = vld [vmem:[%s1 + $0x18] sm:$0xff]
      %v149 = vld [vmem:[%s1 + $0x20] sm:$0xff]
      %v150 = vld [vmem:[%s1 + $0x28] sm:$0xff]
      %v151 = vld [vmem:[%s1 + $0x9] sm:$0x1]
      %v152 = vld [vmem:[%s1 + $0x30] sm:$0xff]
      %v153 = vld [vmem:[%s1 + $0x38] sm:$0xff]
      %v154 = vld [vmem:[%s1 + $0x40] sm:$0xff]
      %v155 = vld [vmem:[%s1 + $0x48] sm:$0xff]
      %v156 = vld [vmem:[%s1 + $0xa] sm:$0x1]
      %v157 = vld [vmem:[%s1 + $0x50] sm:$0xff]
      %v158 = vld [vmem:[%s1 + $0x58] sm:$0xff]
      %v159 = vld [vmem:[%s1 + $0x60] sm:$0xff]
      %v160 = vld [vmem:[%s1 + $0x68] sm:$0xff]
      %v161 = vld [vmem:[%s1 + $0x70] sm:$0xff]
      %v162 = vld [vmem:[%s1 + $0x78] sm:$0xff]
      %v163 = vld [vmem:[%s1 + $0x80] sm:$0xff]
      %v164 = vld [vmem:[%s1 + $0x88] sm:$0xff]
      %v165 = vld [vmem:[%s1 + $0x90] sm:$0xff]
      %v166 = vld [vmem:[%s1 + $0x98] sm:$0xff]
      %v167 = vld [vmem:[%s1 + $0xa0] sm:$0xff]
      %v168 = vld [vmem:[%s1 + $0xa8] sm:$0xff]
      %v169 = vld [vmem:[%s1 + $0xb0] sm:$0xff]
      %v170 = vld [vmem:[%s1 + $0xb8] sm:$0xff]
      %v171 = vld [vmem:[%s1 + $0xc0] sm:$0xff]
      %v172 = vld [vmem:[%s1 + $0xc8] sm:$0xff]
      %v173 = vld [vmem:[%s1 + $0xb] sm:$0x1]
      %v174 = vld [vmem:[%s1 + $0xd0] sm:$0xff]
      %v175 = vld [vmem:[%s1 + $0xd8] sm:$0xff]
      %v176 = vld [vmem:[%s1 + $0xe0] sm:$0xff]
      %v177 = vld [vmem:[%s1 + $0xe8] sm:$0xff]
      %v178 = vld [vmem:[%s1 + $0xf0] sm:$0xff]
      %v179 = vld [vmem:[%s1 + $0xf8] sm:$0xff]
      %v180 = vld [vmem:[%s1 + $0x100] sm:$0xff]
      %v181 = vld [vmem:[%s1 + $0x108] sm:$0xff]
      %vm182 = vcmask 64512
      %v184 = vsel %vm182, %v142, 0
      %186 = vmatprep.subr.mxu0 0.0
      %187 = vmatpush1.msra.mxu0 %v143
      %188 = vmatprep.subr.mxu0 0.0
      %189 = vmatpush1.msra.mxu0 0.0
      %190 = vmatprep.subr.mxu0 0.0
      %191 = vmatpush1.msra.mxu0 0.0
      %192 = vmatprep.subr.mxu0 0.0
      %193 = vmatpush1.msra.mxu0 0.0
      %194 = vmatprep.subr.mxu0 0.0
      %195 = vmatpush1.msra.mxu0 0.0
      %196 = vmatprep.subr.mxu0 0.0
      %197 = vmatpush1.msra.mxu0 0.0
      %198 = vmatprep.subr.mxu0 0.0
      %199 = vmatpush1.msra.mxu0 0.0
      %200 = vmatprep.subr.mxu0 0.0
      %201 = vmatpush1.msra.mxu0 0.0
      %202 = vmatprep.subr.mxu0 0.0
      %203 = vmatpush1.msra.mxu0 0.0
      %204 = vmatprep.subr.mxu0 0.0
      %205 = vmatpush1.msra.mxu0 0.0
      %206 = vmatprep.subr.mxu0 0.0
      %207 = vmatpush1.msra.mxu0 0.0
      %208 = vmatprep.subr.mxu0 0.0
      %209 = vmatpush1.msra.mxu0 0.0
      %210 = vmatprep.subr.mxu0 0.0
      %211 = vmatpush1.msra.mxu0 0.0
      %212 = vmatprep.subr.mxu0 0.0
      %213 = vmatpush1.msra.mxu0 0.0
      %214 = vmatprep.subr.mxu0 0.0
      %215 = vmatpush1.msra.mxu0 0.0
      %216 = vmatprep.subr.mxu0 0.0
      %217 = vmatpush1.msra.mxu0 0.0
      %218 = vmatprep.subr.mxu0 0.0
      %219 = vmatpush1.msra.mxu0 0.0
      %220 = vmatprep.subr.mxu0 0.0
      %221 = vmatpush1.msra.mxu0 0.0
      %222 = vmatprep.subr.mxu0 0.0
      %223 = vmatpush1.msra.mxu0 0.0
      %224 = vmatprep.subr.mxu0 0.0
      %225 = vmatpush1.msra.mxu0 0.0
      %226 = vmatprep.subr.mxu0 0.0
      %227 = vmatpush1.msra.mxu0 0.0
      %228 = vmatprep.subr.mxu0 0.0
      %229 = vmatpush1.msra.mxu0 0.0
      %230 = vmatprep.subr.mxu0 0.0
      %231 = vmatpush1.msra.mxu0 0.0
      %232 = vmatprep.subr.mxu0 0.0
      %233 = vmatpush1.msra.mxu0 0.0
      %234 = vmatprep.subr.mxu0 0.0
      %235 = vmatpush1.msra.mxu0 0.0
      %236 = vmatprep.subr.mxu0 0.0
      %237 = vmatpush1.msra.mxu0 0.0
      %238 = vmatprep.subr.mxu0 0.0
      %239 = vmatpush1.msra.mxu0 0.0
      %240 = vmatprep.subr.mxu0 0.0
      %241 = vmatpush1.msra.mxu0 0.0
      %242 = vmatprep.subr.mxu0 0.0
      %243 = vmatpush1.msra.mxu0 0.0
      %244 = vmatprep.subr.mxu0 0.0
      %245 = vmatpush1.msra.mxu0 0.0
      %246 = vmatprep.subr.mxu0 0.0
      %247 = vmatpush1.msra.mxu0 0.0
      %248 = vmatprep.subr.mxu0 0.0
      %249 = vmatpush1.msra.mxu0 0.0
      %250 = vmatprep.mubr.f32.mxu0 0.0
      %251 = vmatmul.mubr.f32.gmra.mrb[0].mxu0 %v184
      %v252 = vpop.f32.mrb[0].mxu0
      %v253 = vadd.f32 0.0, %v252
      %v254 = vpop.f32.mrb[0].mxu0
      %255 = vdwg.mxu0
      %v256 = vlaneseq
      %v257 = vshrl.u32 %v256, 7
      %v258 = vsub.s32 0, %v257
      %v259 = vrot.slane %v146, %v258
      %v261 = vsel %vm182, %v253, 0
      %263 = vmatprep.subr.mxu0 0.0
      %264 = vmatpush1.msra.mxu0 %v145
      %265 = vmatprep.subr.mxu0 0.0
      %266 = vmatpush1.msra.mxu0 0.0
      %267 = vmatprep.subr.mxu0 0.0
      %268 = vmatpush1.msra.mxu0 0.0
      %269 = vmatprep.subr.mxu0 0.0
      %270 = vmatpush1.msra.mxu0 0.0
      %271 = vmatprep.subr.mxu0 0.0
      %272 = vmatpush1.msra.mxu0 0.0
      %273 = vmatprep.subr.mxu0 0.0
      %274 = vmatpush1.msra.mxu0 0.0
      %275 = vmatprep.subr.mxu0 0.0
      %276 = vmatpush1.msra.mxu0 0.0
      %277 = vmatprep.subr.mxu0 0.0
      %278 = vmatpush1.msra.mxu0 0.0
      %279 = vmatprep.subr.mxu0 0.0
      %280 = vmatpush1.msra.mxu0 0.0
      %281 = vmatprep.subr.mxu0 0.0
      %282 = vmatpush1.msra.mxu0 0.0
      %283 = vmatprep.subr.mxu0 0.0
      %284 = vmatpush1.msra.mxu0 0.0
      %285 = vmatprep.subr.mxu0 0.0
      %286 = vmatpush1.msra.mxu0 0.0
      %287 = vmatprep.subr.mxu0 0.0
      %288 = vmatpush1.msra.mxu0 0.0
      %289 = vmatprep.subr.mxu0 0.0
      %290 = vmatpush1.msra.mxu0 0.0
      %291 = vmatprep.subr.mxu0 0.0
      %292 = vmatpush1.msra.mxu0 0.0
      %293 = vmatprep.subr.mxu0 0.0
      %294 = vmatpush1.msra.mxu0 0.0
      %295 = vmatprep.subr.mxu0 0.0
      %296 = vmatpush1.msra.mxu0 0.0
      %297 = vmatprep.subr.mxu0 0.0
      %298 = vmatpush1.msra.mxu0 0.0
      %299 = vmatprep.subr.mxu0 0.0
      %300 = vmatpush1.msra.mxu0 0.0
      %301 = vmatprep.subr.mxu0 0.0
      %302 = vmatpush1.msra.mxu0 0.0
      %303 = vmatprep.subr.mxu0 0.0
      %304 = vmatpush1.msra.mxu0 0.0
      %305 = vmatprep.subr.mxu0 0.0
      %306 = vmatpush1.msra.mxu0 0.0
      %307 = vmatprep.subr.mxu0 0.0
      %308 = vmatpush1.msra.mxu0 0.0
      %309 = vmatprep.subr.mxu0 0.0
      %310 = vmatpush1.msra.mxu0 0.0
      %311 = vmatprep.subr.mxu0 0.0
      %312 = vmatpush1.msra.mxu0 0.0
      %313 = vmatprep.subr.mxu0 0.0
      %314 = vmatpush1.msra.mxu0 0.0
      %315 = vmatprep.subr.mxu0 0.0
      %316 = vmatpush1.msra.mxu0 0.0
      %317 = vmatprep.subr.mxu0 0.0
      %318 = vmatpush1.msra.mxu0 0.0
      %319 = vmatprep.subr.mxu0 0.0
      %320 = vmatpush1.msra.mxu0 0.0
      %321 = vmatprep.subr.mxu0 0.0
      %322 = vmatpush1.msra.mxu0 0.0
      %323 = vmatprep.subr.mxu0 0.0
      %324 = vmatpush1.msra.mxu0 0.0
      %325 = vmatprep.subr.mxu0 0.0
      %326 = vmatpush1.msra.mxu0 0.0
      %327 = vmatprep.mubr.f32.mxu0 0.0
      %328 = vmatmul.mubr.f32.gmra.mrb[0].mxu0 %v261
      %v329 = vpop.f32.mrb[0].mxu0
      %v330 = vadd.f32 %v259, %v329
      %v331 = vpop.f32.mrb[0].mxu0
      %332 = vdwg.mxu0
      %v333 = vmax.f32 %v330, 0.0
      %334 = vmatprep.subr.mxu0 0.0
      %335 = vmatpush1.msra.mxu0 %v333
      %336 = vmatprep.subr.mxu0 0.0
      %337 = vmatpush1.msra.mxu0 0.0
      %338 = vmatprep.subr.mxu0 0.0
      %339 = vmatpush1.msra.mxu0 0.0
      %340 = vmatprep.subr.mxu0 0.0
      %341 = vmatpush1.msra.mxu0 0.0
      %342 = vmatprep.subr.mxu0 0.0
      %343 = vmatpush1.msra.mxu0 0.0
      %344 = vmatprep.subr.mxu0 0.0
      %345 = vmatpush1.msra.mxu0 0.0
      %346 = vmatprep.subr.mxu0 0.0
      %347 = vmatpush1.msra.mxu0 0.0
      %348 = vmatprep.subr.mxu0 0.0
      %349 = vmatpush1.msra.mxu0 0.0
      %350 = vmatprep.subr.mxu0 0.0
      %351 = vmatpush1.msra.mxu0 0.0
      %352 = vmatprep.subr.mxu0 0.0
      %353 = vmatpush1.msra.mxu0 0.0
      %354 = vmatprep.subr.mxu0 0.0
      %355 = vmatpush1.msra.mxu0 0.0
      %356 = vmatprep.subr.mxu0 0.0
      %357 = vmatpush1.msra.mxu0 0.0
      %358 = vmatprep.subr.mxu0 0.0
      %359 = vmatpush1.msra.mxu0 0.0
      %360 = vmatprep.subr.mxu0 0.0
      %361 = vmatpush1.msra.mxu0 0.0
      %362 = vmatprep.subr.mxu0 0.0
      %363 = vmatpush1.msra.mxu0 0.0
      %364 = vmatprep.subr.mxu0 0.0
      %365 = vmatpush1.msra.mxu0 0.0
      %366 = vmatprep.subr.mxu0 0.0
      %367 = vmatpush1.msra.mxu0 0.0
      %368 = vmatprep.subr.mxu0 0.0
      %369 = vmatpush1.msra.mxu0 0.0
      %370 = vmatprep.subr.mxu0 0.0
      %371 = vmatpush1.msra.mxu0 0.0
      %372 = vmatprep.subr.mxu0 0.0
      %373 = vmatpush1.msra.mxu0 0.0
      %374 = vmatprep.subr.mxu0 0.0
      %375 = vmatpush1.msra.mxu0 0.0
      %376 = vmatprep.subr.mxu0 0.0
      %377 = vmatpush1.msra.mxu0 0.0
      %378 = vmatprep.subr.mxu0 0.0
      %379 = vmatpush1.msra.mxu0 0.0
      %380 = vmatprep.subr.mxu0 0.0
      %381 = vmatpush1.msra.mxu0 0.0
      %382 = vmatprep.subr.mxu0 0.0
      %383 = vmatpush1.msra.mxu0 0.0
      %384 = vmatprep.subr.mxu0 0.0
      %385 = vmatpush1.msra.mxu0 0.0
      %386 = vmatprep.subr.mxu0 0.0
      %387 = vmatpush1.msra.mxu0 0.0
      %388 = vmatprep.subr.mxu0 0.0
      %389 = vmatpush1.msra.mxu0 0.0
      %390 = vmatprep.subr.mxu0 0.0
      %391 = vmatpush1.msra.mxu0 0.0
      %392 = vmatprep.subr.mxu0 0.0
      %393 = vmatpush1.msra.mxu0 0.0
      %394 = vmatprep.subr.mxu0 0.0
      %395 = vmatpush1.msra.mxu0 0.0
      %396 = vmatprep.subr.mxu0 0.0
      %397 = vmatpush1.msra.mxu0 0.0
      %398 = vmatprep.mubr.f32.mxu0 0.0
      %399 = vmatmul.mubr.f32.gmra.mrb[0].mxu0 %v184
      %v400 = vpop.f32.mrb[0].mxu0
      %v401 = vadd.f32 0.0, %v400
      %v402 = vpop.f32.mrb[0].mxu0
      %403 = vdwg.mxu0
      %v404 = vlaneseq
      %v405 = vshrl.u32 %v404, 7
      %v406 = vsub.s32 0, %v405
      %v407 = vrot.slane %v151, %v406
      %vm408 = vcmask 261120
      %v410 = vsel %vm408, %v401, 0
      %412 = vmatprep.subr.mxu0 0.0
      %413 = vmatpush1.msra.mxu0 %v147
      %414 = vmatprep.subr.mxu0 0.0
      %415 = vmatpush1.msra.mxu0 %v148
      %416 = vmatprep.subr.mxu0 0.0
      %417 = vmatpush1.msra.mxu0 %v149
      %418 = vmatprep.subr.mxu0 0.0
      %419 = vmatpush1.msra.mxu0 %v150
      %420 = vmatprep.subr.mxu0 0.0
      %421 = vmatpush1.msra.mxu0 0.0
      %422 = vmatprep.subr.mxu0 0.0
      %423 = vmatpush1.msra.mxu0 0.0
      %424 = vmatprep.subr.mxu0 0.0
      %425 = vmatpush1.msra.mxu0 0.0
      %426 = vmatprep.subr.mxu0 0.0
      %427 = vmatpush1.msra.mxu0 0.0
      %428 = vmatprep.subr.mxu0 0.0
      %429 = vmatpush1.msra.mxu0 0.0
      %430 = vmatprep.subr.mxu0 0.0
      %431 = vmatpush1.msra.mxu0 0.0
      %432 = vmatprep.subr.mxu0 0.0
      %433 = vmatpush1.msra.mxu0 0.0
      %434 = vmatprep.subr.mxu0 0.0
      %435 = vmatpush1.msra.mxu0 0.0
      %436 = vmatprep.subr.mxu0 0.0
      %437 = vmatpush1.msra.mxu0 0.0
      %438 = vmatprep.subr.mxu0 0.0
      %439 = vmatpush1.msra.mxu0 0.0
      %440 = vmatprep.subr.mxu0 0.0
      %441 = vmatpush1.msra.mxu0 0.0
      %442 = vmatprep.subr.mxu0 0.0
      %443 = vmatpush1.msra.mxu0 0.0
      %444 = vmatprep.subr.mxu0 0.0
      %445 = vmatpush1.msra.mxu0 0.0
      %446 = vmatprep.subr.mxu0 0.0
      %447 = vmatpush1.msra.mxu0 0.0
      %448 = vmatprep.subr.mxu0 0.0
      %449 = vmatpush1.msra.mxu0 0.0
      %450 = vmatprep.subr.mxu0 0.0
      %451 = vmatpush1.msra.mxu0 0.0
      %452 = vmatprep.subr.mxu0 0.0
      %453 = vmatpush1.msra.mxu0 0.0
      %454 = vmatprep.subr.mxu0 0.0
      %455 = vmatpush1.msra.mxu0 0.0
      %456 = vmatprep.subr.mxu0 0.0
      %457 = vmatpush1.msra.mxu0 0.0
      %458 = vmatprep.subr.mxu0 0.0
      %459 = vmatpush1.msra.mxu0 0.0
      %460 = vmatprep.subr.mxu0 0.0
      %461 = vmatpush1.msra.mxu0 0.0
      %462 = vmatprep.subr.mxu0 0.0
      %463 = vmatpush1.msra.mxu0 0.0
      %464 = vmatprep.subr.mxu0 0.0
      %465 = vmatpush1.msra.mxu0 0.0
      %466 = vmatprep.subr.mxu0 0.0
      %467 = vmatpush1.msra.mxu0 0.0
      %468 = vmatprep.subr.mxu0 0.0
      %469 = vmatpush1.msra.mxu0 0.0
      %470 = vmatprep.subr.mxu0 0.0
      %471 = vmatpush1.msra.mxu0 0.0
      %472 = vmatprep.subr.mxu0 0.0
      %473 = vmatpush1.msra.mxu0 0.0
      %474 = vmatprep.subr.mxu0 0.0
      %475 = vmatpush1.msra.mxu0 0.0
      %476 = vmatprep.mubr.f32.mxu0 0.0
      %477 = vmatmul.mubr.f32.gmra.mrb[0].mxu0 %v410
      %v478 = vpop.f32.mrb[0].mxu0
      %v479 = vadd.f32 %v407, %v478
      %v480 = vpop.f32.mrb[0].mxu0
      %481 = vdwg.mxu0
      %v482 = vmax.f32 %v479, 0.0
      %v484 = vsel %vm408, %v482, 0
      %486 = vmatprep.subr.mxu0 0.0
      %487 = vmatpush1.msra.mxu0 %v152
      %488 = vmatprep.subr.mxu0 0.0
      %489 = vmatpush1.msra.mxu0 %v153
      %490 = vmatprep.subr.mxu0 0.0
      %491 = vmatpush1.msra.mxu0 %v154
      %492 = vmatprep.subr.mxu0 0.0
      %493 = vmatpush1.msra.mxu0 %v155
      %494 = vmatprep.subr.mxu0 0.0
      %495 = vmatpush1.msra.mxu0 0.0
      %496 = vmatprep.subr.mxu0 0.0
      %497 = vmatpush1.msra.mxu0 0.0
      %498 = vmatprep.subr.mxu0 0.0
      %499 = vmatpush1.msra.mxu0 0.0
      %500 = vmatprep.subr.mxu0 0.0
      %501 = vmatpush1.msra.mxu0 0.0
      %502 = vmatprep.subr.mxu0 0.0
      %503 = vmatpush1.msra.mxu0 0.0
      %504 = vmatprep.subr.mxu0 0.0
      %505 = vmatpush1.msra.mxu0 0.0
      %506 = vmatprep.subr.mxu0 0.0
      %507 = vmatpush1.msra.mxu0 0.0
      %508 = vmatprep.subr.mxu0 0.0
      %509 = vmatpush1.msra.mxu0 0.0
      %510 = vmatprep.subr.mxu0 0.0
      %511 = vmatpush1.msra.mxu0 0.0
      %512 = vmatprep.subr.mxu0 0.0
      %513 = vmatpush1.msra.mxu0 0.0
      %514 = vmatprep.subr.mxu0 0.0
      %515 = vmatpush1.msra.mxu0 0.0
      %516 = vmatprep.subr.mxu0 0.0
      %517 = vmatpush1.msra.mxu0 0.0
      %518 = vmatprep.subr.mxu0 0.0
      %519 = vmatpush1.msra.mxu0 0.0
      %520 = vmatprep.subr.mxu0 0.0
      %521 = vmatpush1.msra.mxu0 0.0
      %522 = vmatprep.subr.mxu0 0.0
      %523 = vmatpush1.msra.mxu0 0.0
      %524 = vmatprep.subr.mxu0 0.0
      %525 = vmatpush1.msra.mxu0 0.0
      %526 = vmatprep.subr.mxu0 0.0
      %527 = vmatpush1.msra.mxu0 0.0
      %528 = vmatprep.subr.mxu0 0.0
      %529 = vmatpush1.msra.mxu0 0.0
      %530 = vmatprep.subr.mxu0 0.0
      %531 = vmatpush1.msra.mxu0 0.0
      %532 = vmatprep.subr.mxu0 0.0
      %533 = vmatpush1.msra.mxu0 0.0
      %534 = vmatprep.subr.mxu0 0.0
      %535 = vmatpush1.msra.mxu0 0.0
      %536 = vmatprep.subr.mxu0 0.0
      %537 = vmatpush1.msra.mxu0 0.0
      %538 = vmatprep.subr.mxu0 0.0
      %539 = vmatpush1.msra.mxu0 0.0
      %540 = vmatprep.subr.mxu0 0.0
      %541 = vmatpush1.msra.mxu0 0.0
      %542 = vmatprep.subr.mxu0 0.0
      %543 = vmatpush1.msra.mxu0 0.0
      %544 = vmatprep.subr.mxu0 0.0
      %545 = vmatpush1.msra.mxu0 0.0
      %546 = vmatprep.subr.mxu0 0.0
      %547 = vmatpush1.msra.mxu0 0.0
      %548 = vmatprep.subr.mxu0 0.0
      %549 = vmatpush1.msra.mxu0 0.0
      %550 = vmatprep.mubr.f32.mxu0 0.0
      %551 = vmatmul.mubr.f32.gmra.mrb[0].mxu0 %v484
      %v552 = vpop.f32.mrb[0].mxu0
      %v553 = vadd.f32 0.0, %v552
      %v554 = vpop.f32.mrb[0].mxu0
      %555 = vdwg.mxu0
      %v556 = vsel %vm408, %v553, 0.0
      %v557 = vrot.slane %v556, 4
      %v558 = vadd.f32 %v556, %v557
      %v559 = vrot.slane %v558, 2
      %v560 = vadd.f32 %v558, %v559
      %v561 = vrot.slane %v560, 1
      %v562 = vadd.f32 %v560, %v561
      %v563 = vadd.f32 %v562, %v156
      %vm564 = vcmask 523264
      %v566 = vsel %vm564, %v144, 0
      %568 = vmatprep.subr.mxu0 0.0
      %569 = vmatpush1.msra.mxu0 %v174
      %570 = vmatprep.subr.mxu0 0.0
      %571 = vmatpush1.msra.mxu0 %v175
      %572 = vmatprep.subr.mxu0 0.0
      %573 = vmatpush1.msra.mxu0 %v176
      %574 = vmatprep.subr.mxu0 0.0
      %575 = vmatpush1.msra.mxu0 %v177
      %576 = vmatprep.subr.mxu0 0.0
      %577 = vmatpush1.msra.mxu0 %v178
      %578 = vmatprep.subr.mxu0 0.0
      %579 = vmatpush1.msra.mxu0 %v179
      %580 = vmatprep.subr.mxu0 0.0
      %581 = vmatpush1.msra.mxu0 %v180
      %582 = vmatprep.subr.mxu0 0.0
      %583 = vmatpush1.msra.mxu0 %v181
      %584 = vmatprep.subr.mxu0 0.0
      %585 = vmatpush1.msra.mxu0 0.0
      %586 = vmatprep.subr.mxu0 0.0
      %587 = vmatpush1.msra.mxu0 0.0
      %588 = vmatprep.subr.mxu0 0.0
      %589 = vmatpush1.msra.mxu0 0.0
      %590 = vmatprep.subr.mxu0 0.0
      %591 = vmatpush1.msra.mxu0 0.0
      %592 = vmatprep.subr.mxu0 0.0
      %593 = vmatpush1.msra.mxu0 0.0
      %594 = vmatprep.subr.mxu0 0.0
      %595 = vmatpush1.msra.mxu0 0.0
      %596 = vmatprep.subr.mxu0 0.0
      %597 = vmatpush1.msra.mxu0 0.0
      %598 = vmatprep.subr.mxu0 0.0
      %599 = vmatpush1.msra.mxu0 0.0
      %600 = vmatprep.subr.mxu0 0.0
      %601 = vmatpush1.msra.mxu0 0.0
      %602 = vmatprep.subr.mxu0 0.0
      %603 = vmatpush1.msra.mxu0 0.0
      %604 = vmatprep.subr.mxu0 0.0
      %605 = vmatpush1.msra.mxu0 0.0
      %606 = vmatprep.subr.mxu0 0.0
      %607 = vmatpush1.msra.mxu0 0.0
      %608 = vmatprep.subr.mxu0 0.0
      %609 = vmatpush1.msra.mxu0 0.0
      %610 = vmatprep.subr.mxu0 0.0
      %611 = vmatpush1.msra.mxu0 0.0
      %612 = vmatprep.subr.mxu0 0.0
      %613 = vmatpush1.msra.mxu0 0.0
      %614 = vmatprep.subr.mxu0 0.0
      %615 = vmatpush1.msra.mxu0 0.0
      %616 = vmatprep.subr.mxu0 0.0
      %617 = vmatpush1.msra.mxu0 0.0
      %618 = vmatprep.subr.mxu0 0.0
      %619 = vmatpush1.msra.mxu0 0.0
      %620 = vmatprep.subr.mxu0 0.0
      %621 = vmatpush1.msra.mxu0 0.0
      %622 = vmatprep.subr.mxu0 0.0
      %623 = vmatpush1.msra.mxu0 0.0
      %624 = vmatprep.subr.mxu0 0.0
      %625 = vmatpush1.msra.mxu0 0.0
      %626 = vmatprep.subr.mxu0 0.0
      %627 = vmatpush1.msra.mxu0 0.0
      %628 = vmatprep.subr.mxu0 0.0
      %629 = vmatpush1.msra.mxu0 0.0
      %630 = vmatprep.subr.mxu0 0.0
      %631 = vmatpush1.msra.mxu0 0.0
      %632 = vmatprep.mubr.f32.mxu0 0.0
      %633 = vmatmul.mubr.f32.gmra.mrb[0].mxu0 %v566
      %v634 = vpop.f32.mrb[0].mxu0
      %v635 = vadd.f32 0.0, %v634
      %v636 = vpop.f32.mrb[0].mxu0
      %637 = vdwg.mxu0
      %v638 = vlaneseq
      %v639 = vshrl.u32 %v638, 7
      %v640 = vsub.s32 0, %v639
      %v641 = vrot.slane %v563, %v640
      %v642 = vmul.f32 %v641, %v157
      %v643 = vmul.f32 %v641, %v158
      %v644 = vmul.f32 %v641, %v159
      %v645 = vmul.f32 %v641, %v160
      %v646 = vmul.f32 %v641, %v161
      %v647 = vmul.f32 %v641, %v162
      %v648 = vmul.f32 %v641, %v163
      %v649 = vmul.f32 %v641, %v164
      %vm650 = vcmask 130048
      %v651 = vsel %vm650, %v642, 0.0
      %652 = vadd.xlane.f32.xlu0 %v651
      %v653 = vpop.xlane.xlu0 %652
      %v654 = vsel %vm650, %v643, 0.0
      %655 = vadd.xlane.f32.xlu0 %v654
      %v656 = vpop.xlane.xlu0 %655
      %v657 = vsel %vm650, %v644, 0.0
      %658 = vadd.xlane.f32.xlu0 %v657
      %v659 = vpop.xlane.xlu0 %658
      %v660 = vsel %vm650, %v645, 0.0
      %661 = vadd.xlane.f32.xlu0 %v660
      %v662 = vpop.xlane.xlu0 %661
      %v663 = vsel %vm650, %v646, 0.0
      %664 = vadd.xlane.f32.xlu0 %v663
      %v665 = vpop.xlane.xlu0 %664
      %v666 = vsel %vm650, %v647, 0.0
      %667 = vadd.xlane.f32.xlu0 %v666
      %v668 = vpop.xlane.xlu0 %667
      %v669 = vsel %vm650, %v648, 0.0
      %670 = vadd.xlane.f32.xlu0 %v669
      %v671 = vpop.xlane.xlu0 %670
      %v672 = vsel %vm650, %v649, 0.0
      %673 = vadd.xlane.f32.xlu0 %v672
      %v674 = vpop.xlane.xlu0 %673
      %v675 = vadd.f32 %v653, %v157
      %v676 = vadd.f32 %v656, %v158
      %v677 = vadd.f32 %v659, %v159
      %v678 = vadd.f32 %v662, %v160
      %v679 = vadd.f32 %v665, %v161
      %v680 = vadd.f32 %v668, %v162
      %v681 = vadd.f32 %v671, %v163
      %v682 = vadd.f32 %v674, %v164
      %v683 = vmax.f32 %v675, 0.0
      %v684 = vmax.f32 %v676, 0.0
      %v685 = vmax.f32 %v677, 0.0
      %v686 = vmax.f32 %v678, 0.0
      %v687 = vmax.f32 %v679, 0.0
      %v688 = vmax.f32 %v680, 0.0
      %v689 = vmax.f32 %v681, 0.0
      %v690 = vmax.f32 %v682, 0.0
      %692 = vset.pattern.permute.xlu0 16
      %693 = vperm.xlu0 %692, %v683
      %v694 = vpop.permute.xlu0 %693
      %697 = vset.pattern.permute.xlu0 16
      %698 = vperm.xlu0 %697, %v684
      %v699 = vpop.permute.xlu0 %698
      %702 = vset.pattern.permute.xlu0 16
      %703 = vperm.xlu0 %702, %v685
      %v704 = vpop.permute.xlu0 %703
      %707 = vset.pattern.permute.xlu0 16
      %708 = vperm.xlu0 %707, %v686
      %v709 = vpop.permute.xlu0 %708
      %712 = vset.pattern.permute.xlu0 16
      %713 = vperm.xlu0 %712, %v687
      %v714 = vpop.permute.xlu0 %713
      %717 = vset.pattern.permute.xlu0 16
      %718 = vperm.xlu0 %717, %v688
      %v719 = vpop.permute.xlu0 %718
      %722 = vset.pattern.permute.xlu0 16
      %723 = vperm.xlu0 %722, %v689
      %v724 = vpop.permute.xlu0 %723
      %727 = vset.pattern.permute.xlu0 16
      %728 = vperm.xlu0 %727, %v690
      %v729 = vpop.permute.xlu0 %728
      %v731 = vmul.f32 %v694, %v165
      %v732 = vmul.f32 %v699, %v166
      %v733 = vmul.f32 %v704, %v167
      %v734 = vmul.f32 %v709, %v168
      %v735 = vmul.f32 %v714, %v169
      %v736 = vmul.f32 %v719, %v170
      %v737 = vmul.f32 %v724, %v171
      %v738 = vmul.f32 %v729, %v172
      %vm739 = vcmask 293888
      %v740 = vsel %vm739, %v731, 0.0
      %v741 = vsel %vm739, %v732, 0.0
      %v742 = vadd.f32 %v740, %v741
      %v743 = vsel %vm739, %v733, 0.0
      %v744 = vadd.f32 %v742, %v743
      %v745 = vsel %vm739, %v734, 0.0
      %v746 = vadd.f32 %v744, %v745
      %v747 = vsel %vm739, %v735, 0.0
      %v748 = vadd.f32 %v746, %v747
      %v749 = vsel %vm739, %v736, 0.0
      %v750 = vadd.f32 %v748, %v749
      %v751 = vsel %vm739, %v737, 0.0
      %v752 = vadd.f32 %v750, %v751
      %v753 = vsel %vm739, %v738, 0.0
      %v754 = vadd.f32 %v752, %v753
      %v755 = vrot.slane %v754, 4
      %v756 = vadd.f32 %v754, %v755
      %v757 = vrot.slane %v756, 2
      %v758 = vadd.f32 %v756, %v757
      %v759 = vrot.slane %v758, 1
      %v760 = vadd.f32 %v758, %v759
      %v761 = vadd.f32 %v760, %v173
      %v762 = vand.u32 2147483647, %v761
      %v763 = vsub.f32 0.0, %v762
      %v764 = vmul.f32 %v763, 1.442695
      %v765 = vpow.pop %v764
      %v766 = vadd.f32 %v765, 1.0
      %v767 = vrcp.pop %v766
      %vm768 = vcmp.ge.f32.partialorder %v761, 0.0
      %v769 = vmul.f32 %v765, %v767
      %v770 = vsel %vm768, %v767, %v769
      %v771 = vmax.f32 %v761, 0.0
      %v772 = vmul.f32 %v761, %v635
      %v773 = vsub.f32 %v771, %v772
      %v774 = vlog2.pop %v766
      %v775 = vmul.f32 %v774, 0.6931472
      %v776 = vadd.f32 %v773, %v775
      %vm777 = vcmask 286720
      %v778 = vsel %vm777, %v776, 0.0
      %779 = vadd.xlane.f32.xlu0 %v778
      %v780 = vpop.xlane.xlu0 %779
      %v781 = vrot.slane %v780, 4
      %v782 = vadd.f32 %v780, %v781
      %v783 = vrot.slane %v782, 2
      %v784 = vadd.f32 %v782, %v783
      %v785 = vrot.slane %v784, 1
      %v786 = vadd.f32 %v784, %v785
      %s787 = vtos %v786
      %v788 = vstv %s787
      %v789 = vrcp.pop 36.0
      %v790 = vmul.f32 %v788, %v789
      %v791 = vadd.f32 %v563, 1.0
      %v792 = vmul.f32 %v563, %v563
      %794 = vrot.lane.b32.xlu0 %v792, 16
      %v795 = vpop.permute.xlu0 %794
      %v797 = vsub.f32 %v791, %v795
      %v798 = vmul.f32 %v563, 1.442695
      %v799 = vpow.pop %v798
      %v800 = vsub.f32 %v797, %v799
      %802 = vrot.lane.b32.xlu0 %v800, 112
      %v803 = vpop.permute.xlu0 %802
      %vm805 = vcmask 122880
      %v806 = vsel %vm805, %v803, 0.0
      %807 = vadd.xlane.f32.xlu0 %v806
      %v808 = vpop.xlane.xlu0 %807
      %v809 = vrot.slane %v808, 4
      %v810 = vadd.f32 %v808, %v809
      %v811 = vrot.slane %v810, 2
      %v812 = vadd.f32 %v810, %v811
      %v813 = vrot.slane %v812, 1
      %v814 = vadd.f32 %v812, %v813
      %s815 = vtos %v814
      %v816 = vstv %s815
      %v817 = vmul.f32 %v816, -0.0078125
      %819 = vrot.lane.b32.xlu0 %v770, 32
      %v820 = vpop.permute.xlu0 %819
      %v822 = vsel %vm408, %v563, %v820
      %vm823 = vcmask 556032
      %v824 = vsel %vm823, %v822, %v790
      %vm825 = vcmask 564224
      %v826 = vsel %vm825, %v824, %v817
      %vm827 = vcmask 572416
      %v828 = vsel %vm827, %v826, 0.0
      %v829 = vlaneseq
      %v830 = vshrl.u32 %v829, 7
      %v831 = vsub.s32 0, %v830
      %v832 = vrot.slane %v828, %v831
      %833 = vst [vmem:[%s141] sm:$0xff] %v832
      %p834 = scmp.lt.s32.totalorder %s13, 7
      %s835 = scalar_select %p834, %s13, 7
      %s836 = smul.addr %s835, 8
      %s837 = scalar_lea.vmem %s2, %s836
      // Predicated region
      $region29: #{graph_vae_forward.1} parent=27 // pred_check
        %p838 = pneg %p78
      $region30: #{graph_vae_forward.1} parent=27 // pred_check_branch
        %840 = sbr.rel (%p838) target = $region32
      $region31: #{graph_vae_forward.1} parent=27 // pred_region
        _
      $region32: #{graph_vae_forward.1} parent=27 // pred_fallthru
        _
    $region28: #{graph_vae_forward.1} parent=5 // pred_fallthru
      _
    %p841 = scmp.le.s32.totalorder 2, %s8
    // Predicated region
    $region33: #{graph_vae_forward.1} parent=5 // pred_check
      %p842 = pneg %p841
    $region34: #{graph_vae_forward.1} parent=5 // pred_check_branch
      %844 = sbr.rel (%p842) target = $region36
    $region35: #{graph_vae_forward.1} parent=5 // pred_region
      %s845 = ssub.s32 %s8, 2
      // Predicated region
      $region37: #{graph_vae_forward.1} parent=35 // pred_check
        %p846 = pneg %p84
      $region38: #{graph_vae_forward.1} parent=35 // pred_check_branch
        %848 = sbr.rel (%p846) target = $region40
      $region39: #{graph_vae_forward.1} parent=35 // pred_region
        %p849 = scmp.lt.s32.totalorder %s14, 7
        %s850 = scalar_select %p849, %s14, 7
        %s851 = smul.addr %s850, 8
        %s852 = scalar_lea.vmem %s2, %s851
      $region40: #{graph_vae_forward.1} parent=35 // pred_fallthru
        _
    $region36: #{graph_vae_forward.1} parent=5 // pred_fallthru
      _
  $region6: #{graph_vae_forward.1} parent=0 // loop_footer
    %s12 = sadd.s32 1, %s8
  $region7: #{graph_vae_forward.1} parent=0 // loop_footer_branch
    %7 = sbr.rel target = $region3
  $region8: #{graph_vae_forward.1} parent=0 // loop_exit
    _

</llo_original>
